<compile_context>
chip_gen: v7x
topology: tpu7x:2x2x1
jax: 0.10.0
libtpu: 0.0.40
codegen_flags: <defaults>
</compile_context>

<pallas_src>
from functools import partial

import jax
import jax.numpy as jnp
from jax.experimental import pallas as pl
from jax.experimental.pallas import tpu as pltpu


# ---------------------------------------------------------------------------
# Pallas kernel: per-block two-layer complex MLP as two real MXU matmuls.
# ---------------------------------------------------------------------------
def _spectral_mlp_kernel(x_ref, w1_ref, w2_ref, y_ref):
    # x_ref : (TN, 2*bs)        bf16   ([x_real | x_imag] on the lane axis)
    # w1_ref: (2*bs, 2*hid)     bf16   ([[W1r, W1i], [-W1i, W1r]] for this block)
    # w2_ref: (2*hid, 2*bs)     bf16
    # y_ref : (TN, 2*bs)        bf16   ([y_real | y_imag])
    h = jnp.dot(x_ref[...], w1_ref[...], preferred_element_type=jnp.float32)
    # ComplexReLU (cartesian, negative_slope=0): ReLU on re/im parts.  re/im
    # live in disjoint lane halves, so a plain elementwise max is exact.
    h = jnp.maximum(h, 0.0)
    y = jnp.dot(h.astype(jnp.bfloat16), w2_ref[...],
                preferred_element_type=jnp.float32)
    y_ref[...] = y.astype(y_ref.dtype)


# ---------------------------------------------------------------------------
# Tiling helpers.
# ---------------------------------------------------------------------------
_ROW_GRAN = 16  # row granularity: covers bf16 (16, 128) native tiling


def _round_up(x, m):
    return ((x + m - 1) // m) * m


def _cdiv(a, b):
    return -(-a // b)


def _vmem_limit_bytes():
    """Scoped-VMEM limit to request from Mosaic.

    ~half of physical capacity, capped at 64 MiB: v5e/v6e (128 MiB phys) ->
    64 MiB (well above v5e's 16 MiB *default* scoped limit); v7x (64 MiB per
    core) -> 32 MiB.  Conservative 32 MiB fallback if the query fails.
    """
    try:
        cap = int(pltpu.get_tpu_info().vmem_capacity_bytes)
    except Exception:  # interpret mode / older jax
        cap = 64 * 1024 * 1024
    return max(16 * 1024 * 1024, min(cap // 2, 64 * 1024 * 1024))


def _choose_row_tiling(n_rows, two_bs, two_hid, num_blocks):
    """Pick the row-tile size TN and padded row count.

    Rows are rounded to _ROW_GRAN first and TN is derived from the tile
    count, so padding never approaches a full extra tile.
    """
    n_g = _round_up(max(n_rows, _ROW_GRAN), _ROW_GRAN)
    limit = _vmem_limit_bytes()
    budget = (limit * 3) // 4                     # headroom for Mosaic scratch
    # Two bf16 per-block weight mats; Pallas double-buffers them even though
    # their index_map is constant along the row axis -> count them twice.
    weights = 2 * (two_bs * two_hid * 2) * 2
    budget = max(budget - weights, 1 << 20)
    # Per-row bytes: bf16 x and y tiles (double-buffered) + f32/bf16 hidden
    # temporaries inside the kernel body.
    per_row = 2 * (two_bs * 2) * 2 + two_hid * (4 + 2)
    tn_max = (budget // per_row) // _ROW_GRAN * _ROW_GRAN
    tn_max = max(_ROW_GRAN, min(2048, tn_max))    # 512-2048 rows ~ roofline sweet spot
    n_tiles = _cdiv(n_g, tn_max)
    # Guarantee >=2 total grid steps so v7x's two TensorCores both get work
    # (the block axis usually provides this already; only force-split rows
    # when num_blocks == 1).
    if num_blocks * n_tiles < 2 and n_g >= 2 * _ROW_GRAN:
        n_tiles = 2
    tn = _round_up(_cdiv(n_g, n_tiles), _ROW_GRAN)
    n_pad = tn * n_tiles
    return tn, n_pad, limit


# ---------------------------------------------------------------------------
# pallas_call wrapper for the blocked spectral MLP.
# ---------------------------------------------------------------------------
def _spectral_mlp_blocked(x_cat, w1p, w2p):
    """x_cat: (nb, N, 2bs) bf16; w1p: (nb, 2bs, 2hid); w2p: (nb, 2hid, 2bs) bf16.

    Returns (nb, N, 2bs) bf16 (f32-accumulated inside the kernel).
    """
    nb, n_rows, two_bs = x_cat.shape
    two_hid = w1p.shape[-1]

    tn, n_pad, vmem_limit = _choose_row_tiling(n_rows, two_bs, two_hid, nb)
    if n_pad != n_rows:
        x_cat = jnp.pad(x_cat, ((0, 0), (0, n_pad - n_rows), (0, 0)))
    n_tiles = n_pad // tn
    grid = (nb, n_tiles)

    flops = 2 * 2 * nb * n_pad * two_bs * two_hid            # two matmuls/block
    bytes_accessed = (nb * n_pad * two_bs * 2 * 2            # bf16 in + bf16 out
                      + 2 * nb * two_bs * two_hid * 2)       # bf16 weights

    y = pl.pallas_call(
        _spectral_mlp_kernel,
        out_shape=jax.ShapeDtypeStruct((nb, n_pad, two_bs), jnp.bfloat16),
        grid_spec=pltpu.PrefetchScalarGridSpec(
            num_scalar_prefetch=0,
            grid=grid,
            in_specs=[
                # x tile changes every step; weights only when the block
                # index changes (outer axis) -> no per-step weight re-DMA.
                pl.BlockSpec((None, tn, two_bs), lambda k, n: (k, n, 0)),
                pl.BlockSpec((None, two_bs, two_hid), lambda k, n: (k, 0, 0)),
                pl.BlockSpec((None, two_hid, two_bs), lambda k, n: (k, 0, 0)),
            ],
            out_specs=pl.BlockSpec((None, tn, two_bs), lambda k, n: (k, n, 0)),
        ),
        compiler_params=pltpu.CompilerParams(
            dimension_semantics=("parallel", "parallel"),
            vmem_limit_bytes=int(vmem_limit)),
        cost_estimate=pl.CostEstimate(
            flops=int(flops), transcendentals=0,
            bytes_accessed=int(bytes_accessed)),
    )(x_cat, w1p, w2p)

    return y[:, :n_rows] if n_pad != n_rows else y


# ---------------------------------------------------------------------------
# Host-side helpers.
# ---------------------------------------------------------------------------
def _pack_complex_blocks(w):
    """(nb, din, dout, 2) complex block weights -> (nb, 2*din, 2*dout) bf16.

    Per-block real packing [[Wr, Wi], [-Wi, Wr]] so that
    [xr | xi] @ pack(W) == [Re(x W) | Im(x W)].
    """
    wr, wi = w[..., 0], w[..., 1]
    top = jnp.concatenate([wr, wi], axis=-1)
    bot = jnp.concatenate([-wi, wr], axis=-1)
    return jnp.concatenate([top, bot], axis=-2).astype(jnp.bfloat16)


def pack_afno_weights(w1, w2):
    """Precompute the packed bf16 weights (hoist out of the per-forward path)."""
    return _pack_complex_blocks(w1), _pack_complex_blocks(w2)


def _softshrink(v, lambd):
    return jnp.sign(v) * jnp.maximum(jnp.abs(v) - lambd, 0.0)


def _mode_mask(H, Wf, frac):
    total_h = H // 2 + 1
    kept_h = int(total_h * frac)
    kept_w = int(Wf * frac)
    if kept_h == total_h and kept_w == Wf:
        return None
    rows = jnp.arange(H)
    cols = jnp.arange(Wf)
    if kept_h == total_h:
        row_keep = jnp.ones((H,), dtype=bool)
    else:
        row_keep = (rows < kept_h) | (rows >= H - kept_h)
    col_keep = cols < kept_w
    return (row_keep[:, None] & col_keep[None, :]).astype(jnp.float32)


# ---------------------------------------------------------------------------
# Full AFNO2D forward (FFT glue in JAX, spectral MLP in Pallas).
# ---------------------------------------------------------------------------
def afno2d_forward(x, w1, b1, w2, num_blocks,
                   sparsity_threshold=0.0, hard_thresholding_fraction=1.0,
                   packed_weights=None):
    dtype = x.dtype
    B, C, H, W = x.shape
    nb = num_blocks
    assert C % nb == 0
    bs = C // nb
    Wf = W // 2 + 1
    total_h = H // 2 + 1
    kept_h = int(total_h * hard_thresholding_fraction)
    kept_w = int(Wf * hard_thresholding_fraction)

    bias = x

    # rfft2 over (H, W), ortho norm -> (B, C, H, Wf) complex64
    xf = jnp.fft.rfft2(x.astype(jnp.float32), axes=(-2, -1), norm="ortho")

    # Only the kept modes go through the spectral MLP (matches the torch
    # module; identity at the default fraction of 1).
    full_rows = kept_h == total_h
    if full_rows:
        xk, Hk = xf, H
    else:
        xk = jnp.concatenate([xf[:, :, :kept_h], xf[:, :, H - kept_h:]], axis=2)
        Hk = 2 * kept_h
    xk = xk[..., :kept_w]                                   # (B, C, Hk, Wk)
    Wk = kept_w
    n_rows = B * Hk * Wk

    # (B, C, Hk, Wk) -> (nb, N, bs): channels-last within each block, then
    # [re | im] concatenated on the lane axis -> (nb, N, 2bs) bf16.
    xk = jnp.transpose(xk, (1, 0, 2, 3)).reshape(nb, bs, n_rows)
    xk = jnp.transpose(xk, (0, 2, 1))                        # (nb, N, bs)
    x_cat = jnp.concatenate([jnp.real(xk), jnp.imag(xk)],
                            axis=-1).astype(jnp.bfloat16)    # (nb, N, 2bs)

    if packed_weights is None:
        w1p, w2p = pack_afno_weights(w1, w2)   # cheap (no dense block-diag)
    else:
        w1p, w2p = packed_weights

    y = _spectral_mlp_blocked(x_cat, w1p, w2p)               # (nb, N, 2bs) bf16
    y = y.astype(jnp.float32)
    yc = y[..., :bs] + 1j * y[..., bs:]                      # (nb, N, bs) c64
    yc = jnp.transpose(yc, (0, 2, 1)).reshape(C, B, Hk, Wk)
    yc = jnp.transpose(yc, (1, 0, 2, 3))                     # (B, C, Hk, Wk)

    # Scatter the kept modes back into the full spectrum (zeros elsewhere).
    if full_rows and Wk == Wf:
        yfull = yc
    else:
        yfull = jnp.zeros((B, C, H, Wf), dtype=yc.dtype)
        if full_rows:
            yfull = yfull.at[:, :, :, :Wk].set(yc)
        else:
            yfull = yfull.at[:, :, :kept_h, :Wk].set(yc[:, :, :kept_h])
            yfull = yfull.at[:, :, H - kept_h:, :Wk].set(yc[:, :, kept_h:])

    if sparsity_threshold != 0.0:
        yfull = (_softshrink(jnp.real(yfull), sparsity_threshold)
                 + 1j * _softshrink(jnp.imag(yfull), sparsity_threshold))

    out = jnp.fft.irfft2(yfull, s=(H, W), axes=(-2, -1), norm="ortho")
    out = out.astype(dtype)
    return out + b1.astype(dtype) + bias


# ---------------------------------------------------------------------------
# Pure-JAX (f32) reference, mirroring the PyTorch module's forward.
# ---------------------------------------------------------------------------
def _reference_forward(x, w1, b1, w2, num_blocks,
                       sparsity_threshold=0.0, hard_thresholding_fraction=1.0):
    dtype = x.dtype
    B, C, H, W = x.shape
    bs = C // num_blocks
    Wf = W // 2 + 1
    bias = x
    xf = jnp.fft.rfft2(x.astype(jnp.float32), axes=(-2, -1), norm="ortho")
    xf = xf.reshape(B, num_blocks, bs, H, Wf)
    w1c = w1[..., 0] + 1j * w1[..., 1]
    w2c = w2[..., 0] + 1j * w2[..., 1]
    h = jnp.einsum("bkixy,kio->bkoxy", xf, w1c)
    h = jnp.maximum(h.real, 0.0) + 1j * jnp.maximum(h.imag, 0.0)
    y = jnp.einsum("bkoxy,kon->bknxy", h, w2c).reshape(B, C, H, Wf)
    mask = _mode_mask(H, Wf, hard_thresholding_fraction)
    if mask is not None:
        y = y * mask
    if sparsity_threshold != 0.0:
        y = (_softshrink(jnp.real(y), sparsity_threshold)
             + 1j * _softshrink(jnp.imag(y), sparsity_threshold))
    out = jnp.fft.irfft2(y, s=(H, W), axes=(-2, -1), norm="ortho").astype(dtype)
    return out + b1.astype(dtype) + bias


# ---------------------------------------------------------------------------
# Self-test.
# ---------------------------------------------------------------------------
if __name__ == "__main__":
    def check(B, C, H, W, num_blocks, factor, frac, key, tag):
        bs = C // num_blocks
        hid = bs * factor
        scale = 0.02
        k_x, k_w1, k_b1, k_w2 = jax.random.split(key, 4)
        x = jax.random.normal(k_x, (B, C, H, W), dtype=jnp.float32)
        w1 = scale * jax.random.normal(k_w1, (num_blocks, bs, hid, 2),
                                       dtype=jnp.float32)
        b1 = scale * jax.random.normal(k_b1, (1, C, 1, 1), dtype=jnp.float32)
        w2 = scale * jax.random.normal(k_w2, (num_blocks, hid, bs, 2),
                                       dtype=jnp.float32)

        fwd = jax.jit(partial(afno2d_forward, num_blocks=num_blocks,
                              sparsity_threshold=0.0,
                              hard_thresholding_fraction=frac))
        out = jax.block_until_ready(fwd(x, w1, b1, w2))
        ref = jax.block_until_ready(
            _reference_forward(x, w1, b1, w2, num_blocks,
                               sparsity_threshold=0.0,
                               hard_thresholding_fraction=frac))

        assert out.shape == (B, C, H, W), tag
        # bf16 MXU inputs/outputs vs f32 reference -> small numeric delta.
        err = float(jnp.max(jnp.abs(out - ref)))
        assert jnp.allclose(out, ref, atol=2e-3, rtol=2e-3), (tag, err)
        # sanity: the spectral path actually contributed.
        assert float(jnp.max(jnp.abs(out - x - b1))) > 1e-4, tag

    key = jax.random.PRNGKey(0)
    k1, k2 = jax.random.split(key)

    # Small config consistent with the module defaults (hidden_size=32,
    # num_blocks=4 -> block_size=8, hidden_size_factor=1).
    check(B=2, C=32, H=16, W=16, num_blocks=4, factor=1, frac=1.0,
          key=k1, tag="small")
    # Hard-thresholding path: only the kept modes go through the Pallas MLP.
    check(B=2, C=32, H=16, W=16, num_blocks=4, factor=1, frac=0.5,
          key=k1, tag="thresholded")
    # Production-like lane width (2*block_size = 256): exercises unmasked,
    # lane-dense stores and full MXU tiles.
    check(B=1, C=256, H=16, W=16, num_blocks=2, factor=1, frac=1.0,
          key=k2, tag="wide")

    print("KERNEL_OK")
</pallas_src>

<mosaic_0001>
module attributes {stable_mosaic.version = 11 : i64} {
  func.func @_spectral_mlp_kernel(%arg0: i32, %arg1: i32, %arg2: memref<1x288x16xbf16, #tpu.memory_space<vmem>>, %arg3: memref<1x16x16xbf16, #tpu.memory_space<vmem>>, %arg4: memref<1x16x16xbf16, #tpu.memory_space<vmem>>, %arg5: memref<1x288x16xbf16, #tpu.memory_space<vmem>>) attributes {dimension_semantics = [#tpu.dimension_semantics<parallel>, #tpu.dimension_semantics<parallel>], iteration_bounds = array<i64: 4, 1>, scalar_prefetch = 0 : i64, scratch_operands = 0 : i64, tpu.core_type = #tpu.core_type<tc>, window_params = [{transform_indices = @transform_0, window_bounds = array<i64: 1, 288, 16>}, {transform_indices = @transform_1, window_bounds = array<i64: 1, 16, 16>}, {transform_indices = @transform_2, window_bounds = array<i64: 1, 16, 16>}, {transform_indices = @transform_3, window_bounds = array<i64: 1, 288, 16>}]} {
    %c0 = arith.constant 0 : index
    %c0_0 = arith.constant 0 : index
    %c0_1 = arith.constant 0 : index
    %0 = vector.load %arg2[%c0, %c0_0, %c0_1] : memref<1x288x16xbf16, #tpu.memory_space<vmem>>, vector<1x288x16xbf16>
    %1 = vector.shape_cast %0 : vector<1x288x16xbf16> to vector<288x16xbf16>
    %c0_2 = arith.constant 0 : index
    %c0_3 = arith.constant 0 : index
    %c0_4 = arith.constant 0 : index
    %2 = vector.load %arg3[%c0_2, %c0_3, %c0_4] : memref<1x16x16xbf16, #tpu.memory_space<vmem>>, vector<1x16x16xbf16>
    %3 = vector.shape_cast %2 : vector<1x16x16xbf16> to vector<16x16xbf16>
    %cst = arith.constant dense<0.000000e+00> : vector<288x16xf32>
    %4 = tpu.matmul %1, %3, %cst {dimension_numbers = #tpu.dot_dimension_numbers<[1], [0], [0], [1], [0, 0, 1, 1], [], []>} : vector<288x16xbf16>, vector<16x16xbf16>, vector<288x16xf32> -> vector<288x16xf32>
    %cst_5 = arith.constant 0.000000e+00 : f32
    %5 = vector.broadcast %cst_5 : f32 to vector<288x16xf32>
    %6 = arith.maximumf %4, %5 : vector<288x16xf32>
    %7 = arith.truncf %6 : vector<288x16xf32> to vector<288x16xbf16>
    %c0_6 = arith.constant 0 : index
    %c0_7 = arith.constant 0 : index
    %c0_8 = arith.constant 0 : index
    %8 = vector.load %arg4[%c0_6, %c0_7, %c0_8] : memref<1x16x16xbf16, #tpu.memory_space<vmem>>, vector<1x16x16xbf16>
    %9 = vector.shape_cast %8 : vector<1x16x16xbf16> to vector<16x16xbf16>
    %cst_9 = arith.constant dense<0.000000e+00> : vector<288x16xf32>
    %10 = tpu.matmul %7, %9, %cst_9 {dimension_numbers = #tpu.dot_dimension_numbers<[1], [0], [0], [1], [0, 0, 1, 1], [], []>} : vector<288x16xbf16>, vector<16x16xbf16>, vector<288x16xf32> -> vector<288x16xf32>
    %11 = arith.truncf %10 : vector<288x16xf32> to vector<288x16xbf16>
    %c0_10 = arith.constant 0 : index
    %c0_11 = arith.constant 0 : index
    %c0_12 = arith.constant 0 : index
    %12 = vector.load %arg5[%c0_10, %c0_11, %c0_12] : memref<1x288x16xbf16, #tpu.memory_space<vmem>>, vector<1x288x16xbf16>
    %13 = vector.shape_cast %12 : vector<1x288x16xbf16> to vector<288x16xbf16>
    %14 = vector.shape_cast %11 : vector<288x16xbf16> to vector<1x288x16xbf16>
    tpu.vector_store %arg5[%c0_10, %c0_11, %c0_12], %14 {strides = array<i32>} : memref<1x288x16xbf16, #tpu.memory_space<vmem>>, vector<1x288x16xbf16>,
    return
  }
  func.func @transform_0(%arg0: i32, %arg1: i32) -> (i32, i32, i32) {
    %c0_i32 = arith.constant 0 : i32
    %c0_i32_0 = arith.constant 0 : i32
    return %arg0, %arg1, %c0_i32 : i32, i32, i32
  }
  func.func @transform_1(%arg0: i32, %arg1: i32) -> (i32, i32, i32) {
    %c0_i32 = arith.constant 0 : i32
    %c0_i32_0 = arith.constant 0 : i32
    %c0_i32_1 = arith.constant 0 : i32
    return %arg0, %c0_i32, %c0_i32_0 : i32, i32, i32
  }
  func.func @transform_2(%arg0: i32, %arg1: i32) -> (i32, i32, i32) {
    %c0_i32 = arith.constant 0 : i32
    %c0_i32_0 = arith.constant 0 : i32
    %c0_i32_1 = arith.constant 0 : i32
    return %arg0, %c0_i32, %c0_i32_0 : i32, i32, i32
  }
  func.func @transform_3(%arg0: i32, %arg1: i32) -> (i32, i32, i32) {
    %c0_i32 = arith.constant 0 : i32
    %c0_i32_0 = arith.constant 0 : i32
    return %arg0, %arg1, %c0_i32 : i32, i32, i32
  }
}

</mosaic_0001>

<llo_original>
// kernel: afno2d_forward.1
$region0: #{afno2d_forward.1}
  #allocation0 [shape = 'u32[]', space=smem, size = 0x4, offset = 0x4, fixed_abs, tag = 'smem constant byte address 0x4 - core index']
  #allocation1 [shape = 'u32[144,128]{1,0:T(1,128)}', space=vmem, size = 0x12000, scoped, tag = 'internal scratch']
  %s0 = inlined_call_operand.vmem [shape: bf16[4,288,16], index: 0, kind: input, shape index: {}]
  %s1 = inlined_call_operand.vmem [shape: bf16[4,16,16], index: 1, kind: input, shape index: {}]
  %s2 = inlined_call_operand.vmem [shape: bf16[4,16,16], index: 2, kind: input, shape index: {}]
  %s3 = inlined_call_operand.vmem [shape: bf16[4,288,16], index: 3, kind: output, shape index: {}]
  %s4 = sld [smem:[#allocation0]]
  $region45: #{afno2d_forward.1} parent=0
    _
  %s6 = ssub.s32 1, %s4
  %s7 = scalar_select 0, %s6, %s4
  loop: start=0, step=1, limit=6
  $region2: #{afno2d_forward.1} parent=0 // loop_pre_header
    _
  $region3: #{afno2d_forward.1} parent=0 // loop_header
    %s9 = sphi 0, %s13
    %p10 = scmp.ge.s32.totalorder %s9, 6
    %s16 = sphi 0, %s28
    %s17 = sphi 0, %s24
    %s18 = sphi 0, %s16
    %s19 = sphi 0, %s17
    %s20 = sphi 0, %s18
    %s21 = sphi 0, %s19
    %s33 = sphi 0, %s35
    %s36 = sphi 0, %s33
    %s37 = sphi 0, %s36
    %s53 = sphi 0, %s37
    %s59 = sphi 0, %s61
    %s62 = sphi 0, %s59
    %s63 = sphi 0, %s62
    %s79 = sphi 0, %s63
    %s85 = sphi 0, %s87
    %s88 = sphi 0, %s85
    %s89 = sphi 0, %s88
    %s105 = sphi 0, %s89
    %s113 = sphi 0, %s115
    %s116 = sphi 0, %s113
    %s117 = sphi 0, %s116
    %s133 = sphi 0, %s117
  $region4: #{afno2d_forward.1} parent=0 // loop_header_branch
    %12 = sbr.rel (%p10) target = $region8
  $region5: #{afno2d_forward.1} parent=0 // loop_body
    %s14 = ssub.s32 %s9, 1
    %s15 = ssub.s32 %s9, 2
    %s22 = sadd.s32 1, %s17
    %p23 = scmp.ge.s32.totalorder %s22, 1
    %s24 = scalar_select %p23, 0, %s22
    %s25 = sadd.s32 1, %s16
    %s26 = scalar_select %p23, %s25, %s16
    %p27 = scmp.ge.s32.totalorder %s26, 4
    %s28 = scalar_select %p27, 0, %s26
    %s29 = ssub.s32 %s16, %s28
    %s30 = ssub.s32 %s17, %s24
    %s31 = sor.u32 %s29, %s30
    %p32 = scmp.eq.s32.totalorder %s31, 0
    %s34 = sadd.s32 %s33, 1
    %s35 = scalar_select %p32, %s33, %s34
    %p38 = pneg %p32
    %p39 = scmp.eq.s32.totalorder %s9, 3
    %p40 = por %p38, %p39
    %p41 = scmp.ne.s32.totalorder %s33, %s36
    %p42 = scmp.eq.s32.totalorder %s9, 0
    %p43 = por %p41, %p42
    %p44 = scmp.ne.s32.totalorder %s33, %s36
    %p45 = scmp.eq.s32.totalorder %s14, 3
    %p46 = por %p44, %p45
    %p47 = scmp.ne.s32.totalorder %s36, %s37
    %p48 = scmp.eq.s32.totalorder %s14, 0
    %p49 = por %p47, %p48
    %p50 = scmp.ne.s32.totalorder %s36, %s37
    %p51 = scmp.eq.s32.totalorder %s15, 3
    %p52 = por %p50, %p51
    %p54 = scmp.ne.s32.totalorder %s37, %s53
    %p55 = scmp.eq.s32.totalorder %s15, 0
    %p56 = por %p54, %p55
    %s57 = ssub.s32 %s16, %s28
    %p58 = scmp.eq.s32.totalorder %s57, 0
    %s60 = sadd.s32 %s59, 1
    %s61 = scalar_select %p58, %s59, %s60
    %p64 = pneg %p58
    %p65 = scmp.eq.s32.totalorder %s9, 3
    %p66 = por %p64, %p65
    %p67 = scmp.ne.s32.totalorder %s59, %s62
    %p68 = scmp.eq.s32.totalorder %s9, 0
    %p69 = por %p67, %p68
    %p70 = scmp.ne.s32.totalorder %s59, %s62
    %p71 = scmp.eq.s32.totalorder %s14, 3
    %p72 = por %p70, %p71
    %p73 = scmp.ne.s32.totalorder %s62, %s63
    %p74 = scmp.eq.s32.totalorder %s14, 0
    %p75 = por %p73, %p74
    %p76 = scmp.ne.s32.totalorder %s62, %s63
    %p77 = scmp.eq.s32.totalorder %s15, 3
    %p78 = por %p76, %p77
    %p80 = scmp.ne.s32.totalorder %s63, %s79
    %p81 = scmp.eq.s32.totalorder %s15, 0
    %p82 = por %p80, %p81
    %s83 = ssub.s32 %s16, %s28
    %p84 = scmp.eq.s32.totalorder %s83, 0
    %s86 = sadd.s32 %s85, 1
    %s87 = scalar_select %p84, %s85, %s86
    %p90 = pneg %p84
    %p91 = scmp.eq.s32.totalorder %s9, 3
    %p92 = por %p90, %p91
    %p93 = scmp.ne.s32.totalorder %s85, %s88
    %p94 = scmp.eq.s32.totalorder %s9, 0
    %p95 = por %p93, %p94
    %p96 = scmp.ne.s32.totalorder %s85, %s88
    %p97 = scmp.eq.s32.totalorder %s14, 3
    %p98 = por %p96, %p97
    %p99 = scmp.ne.s32.totalorder %s88, %s89
    %p100 = scmp.eq.s32.totalorder %s14, 0
    %p101 = por %p99, %p100
    %p102 = scmp.ne.s32.totalorder %s88, %s89
    %p103 = scmp.eq.s32.totalorder %s15, 3
    %p104 = por %p102, %p103
    %p106 = scmp.ne.s32.totalorder %s89, %s105
    %p107 = scmp.eq.s32.totalorder %s15, 0
    %p108 = por %p106, %p107
    %s109 = ssub.s32 %s16, %s28
    %s110 = ssub.s32 %s17, %s24
    %s111 = sor.u32 %s109, %s110
    %p112 = scmp.eq.s32.totalorder %s111, 0
    %s114 = sadd.s32 %s113, 1
    %s115 = scalar_select %p112, %s113, %s114
    %p118 = pneg %p112
    %p119 = scmp.eq.s32.totalorder %s9, 3
    %p120 = por %p118, %p119
    %p121 = scmp.ne.s32.totalorder %s113, %s116
    %p122 = scmp.eq.s32.totalorder %s9, 0
    %p123 = por %p121, %p122
    %p124 = scmp.ne.s32.totalorder %s113, %s116
    %p125 = scmp.eq.s32.totalorder %s14, 3
    %p126 = por %p124, %p125
    %p127 = scmp.ne.s32.totalorder %s116, %s117
    %p128 = scmp.eq.s32.totalorder %s14, 0
    %p129 = por %p127, %p128
    %p130 = scmp.ne.s32.totalorder %s116, %s117
    %p131 = scmp.eq.s32.totalorder %s15, 3
    %p132 = por %p130, %p131
    %p134 = scmp.ne.s32.totalorder %s117, %s133
    %p135 = scmp.eq.s32.totalorder %s15, 0
    %p136 = por %p134, %p135
    %p137 = scmp.le.s32.totalorder 1, %s9
    %p138 = scmp.lt.s32.totalorder %s9, 5
    %p139 = pnand %p137, %p138
    %p140 = pneg %p139
    // Predicated region
    $region9: #{afno2d_forward.1} parent=5 // pred_check
      _
    $region10: #{afno2d_forward.1} parent=5 // pred_check_branch
      %142 = sbr.rel (%p139) target = $region12
    $region11: #{afno2d_forward.1} parent=5 // pred_region
      %s143 = ssub.s32 %s9, 1
    $region12: #{afno2d_forward.1} parent=5 // pred_fallthru
      _
    %p144 = scmp.lt.s32.totalorder %s9, 4
    // Predicated region
    $region13: #{afno2d_forward.1} parent=5 // pred_check
      %p145 = pneg %p144
    $region14: #{afno2d_forward.1} parent=5 // pred_check_branch
      %147 = sbr.rel (%p145) target = $region16
    $region15: #{afno2d_forward.1} parent=5 // pred_region
      // Predicated region
      $region17: #{afno2d_forward.1} parent=15 // pred_check
        %p148 = pneg %p43
      $region18: #{afno2d_forward.1} parent=15 // pred_check_branch
        %150 = sbr.rel (%p148) target = $region20
      $region19: #{afno2d_forward.1} parent=15 // pred_region
        %s151 = smul.u32 36, %s17
        %p152 = scmp.lt.s32.totalorder %s16, 3
        %s153 = scalar_select %p152, %s16, 3
        %p154 = scmp.lt.s32.totalorder %s151, 35
        %s155 = scalar_select %p154, %s151, 35
        %s156 = smul.addr %s153, 36
        %s157 = sadd.s32 %s155, %s156
        %s158 = smul.addr %s157, 4
        %s159 = scalar_lea.vmem %s0, %s158
        %s160 = smul.u32 36, %s17
      $region20: #{afno2d_forward.1} parent=15 // pred_fallthru
        _
      // Predicated region
      $region21: #{afno2d_forward.1} parent=15 // pred_check
        %p161 = pneg %p69
      $region22: #{afno2d_forward.1} parent=15 // pred_check_branch
        %163 = sbr.rel (%p161) target = $region24
      $region23: #{afno2d_forward.1} parent=15 // pred_region
        %p164 = scmp.lt.s32.totalorder %s16, 3
        %s165 = scalar_select %p164, %s16, 3
        %s166 = smul.addr %s165, 2
        %s167 = smul.addr %s166, 4
        %s168 = scalar_lea.vmem %s1, %s167
      $region24: #{afno2d_forward.1} parent=15 // pred_fallthru
        _
      // Predicated region
      $region25: #{afno2d_forward.1} parent=15 // pred_check
        %p169 = pneg %p95
      $region26: #{afno2d_forward.1} parent=15 // pred_check_branch
        %171 = sbr.rel (%p169) target = $region28
      $region27: #{afno2d_forward.1} parent=15 // pred_region
        %p172 = scmp.lt.s32.totalorder %s16, 3
        %s173 = scalar_select %p172, %s16, 3
        %s174 = smul.addr %s173, 2
        %s175 = smul.addr %s174, 4
        %s176 = scalar_lea.vmem %s2, %s175
      $region28: #{afno2d_forward.1} parent=15 // pred_fallthru
        _
    $region16: #{afno2d_forward.1} parent=5 // pred_fallthru
      _
    %p177 = scmp.le.s32.totalorder 1, %s9
    %p178 = scmp.lt.s32.totalorder %s9, 5
    %p179 = pnand %p177, %p178
    %p180 = pneg %p179
    // Predicated region
    $region29: #{afno2d_forward.1} parent=5 // pred_check
      _
    $region30: #{afno2d_forward.1} parent=5 // pred_check_branch
      %182 = sbr.rel (%p179) target = $region32
    $region31: #{afno2d_forward.1} parent=5 // pred_region
      %s183 = ssub.s32 %s9, 1
      %s184 = smul.u32 36, %s19
      %p185 = scmp.lt.s32.totalorder %s18, 3
      %s186 = scalar_select %p185, %s18, 3
      %p187 = scmp.lt.s32.totalorder %s184, 35
      %s188 = scalar_select %p187, %s184, 35
      %s189 = smul.addr %s186, 36
      %s190 = sadd.s32 %s188, %s189
      %s191 = smul.addr %s190, 4
      %s192 = scalar_lea.vmem %s0, %s191
      %p193 = pneg %p49
      %p194 = pneg %p46
      %p195 = scmp.lt.s32.totalorder %s18, 3
      %s196 = scalar_select %p195, %s18, 3
      %s197 = smul.addr %s196, 2
      %s198 = smul.addr %s197, 4
      %s199 = scalar_lea.vmem %s1, %s198
      %p200 = pneg %p75
      %p201 = pneg %p72
      %p202 = scmp.lt.s32.totalorder %s18, 3
      %s203 = scalar_select %p202, %s18, 3
      %s204 = smul.addr %s203, 2
      %s205 = smul.addr %s204, 4
      %s206 = scalar_lea.vmem %s2, %s205
      %p207 = pneg %p101
      %p208 = pneg %p98
      %p209 = pneg %p129
      %p210 = pneg %p126
      %s211 = smul.u32 36, %s19
      %p212 = scmp.lt.s32.totalorder %s18, 3
      %s213 = scalar_select %p212, %s18, 3
      %p214 = scmp.lt.s32.totalorder %s211, 35
      %s215 = scalar_select %p214, %s211, 35
      %s216 = smul.addr %s213, 36
      %s217 = sadd.s32 %s215, %s216
      %s218 = smul.addr %s217, 4
      %s219 = scalar_lea.vmem %s3, %s218
      %s220 = smul.u32 36, %s19
      %p221 = scmp.lt.s32.totalorder %s18, 3
      %s222 = scalar_select %p221, %s18, 3
      %p223 = scmp.lt.s32.totalorder %s220, 35
      %s224 = scalar_select %p223, %s220, 35
      %s225 = smul.addr %s222, 36
      %s226 = sadd.s32 %s224, %s225
      %s227 = smul.addr %s226, 4
      %s228 = scalar_lea.vmem %s0, %s227
      %s229 = smul.u32 36, %s19
      %p230 = scmp.lt.s32.totalorder %s18, 3
      %s231 = scalar_select %p230, %s18, 3
      %s232 = smul.addr %s231, 2
      %s233 = smul.addr %s232, 4
      %s234 = scalar_lea.vmem %s1, %s233
      %p235 = scmp.lt.s32.totalorder %s18, 3
      %s236 = scalar_select %p235, %s18, 3
      %s237 = smul.addr %s236, 2
      %s238 = smul.addr %s237, 4
      %s239 = scalar_lea.vmem %s2, %s238
      %s240 = smul.u32 36, %s19
      %p241 = scmp.lt.s32.totalorder %s18, 3
      %s242 = scalar_select %p241, %s18, 3
      %p243 = scmp.lt.s32.totalorder %s240, 35
      %s244 = scalar_select %p243, %s240, 35
      %s245 = smul.addr %s242, 36
      %s246 = sadd.s32 %s244, %s245
      %s247 = smul.addr %s246, 4
      %s248 = scalar_lea.vmem %s3, %s247
      %s249 = smul.u32 36, %s19
      %v251 = vld [vmem:[%s228] sm:$0xf]
      %v252 = vld [vmem:[%s228 + $0x4] sm:$0xf]
      %v253 = vld [vmem:[%s228 + $0x8] sm:$0xf]
      %v254 = vld [vmem:[%s228 + $0xc] sm:$0xf]
      %v255 = vld [vmem:[%s228 + $0x10] sm:$0xf]
      %v256 = vld [vmem:[%s228 + $0x14] sm:$0xf]
      %v257 = vld [vmem:[%s228 + $0x18] sm:$0xf]
      %v258 = vld [vmem:[%s228 + $0x1c] sm:$0xf]
      %v259 = vld [vmem:[%s228 + $0x20] sm:$0xf]
      %v260 = vld [vmem:[%s228 + $0x24] sm:$0xf]
      %v261 = vld [vmem:[%s228 + $0x28] sm:$0xf]
      %v262 = vld [vmem:[%s228 + $0x2c] sm:$0xf]
      %v263 = vld [vmem:[%s228 + $0x30] sm:$0xf]
      %v264 = vld [vmem:[%s228 + $0x34] sm:$0xf]
      %v265 = vld [vmem:[%s228 + $0x38] sm:$0xf]
      %v266 = vld [vmem:[%s228 + $0x3c] sm:$0xf]
      %v267 = vld [vmem:[%s228 + $0x40] sm:$0xf]
      %v268 = vld [vmem:[%s228 + $0x44] sm:$0xf]
      %v269 = vld [vmem:[%s228 + $0x48] sm:$0xf]
      %v270 = vld [vmem:[%s228 + $0x4c] sm:$0xf]
      %v271 = vld [vmem:[%s228 + $0x50] sm:$0xf]
      %v272 = vld [vmem:[%s228 + $0x54] sm:$0xf]
      %v273 = vld [vmem:[%s228 + $0x58] sm:$0xf]
      %v274 = vld [vmem:[%s228 + $0x5c] sm:$0xf]
      %v275 = vld [vmem:[%s228 + $0x60] sm:$0xf]
      %v276 = vld [vmem:[%s228 + $0x64] sm:$0xf]
      %v277 = vld [vmem:[%s228 + $0x68] sm:$0xf]
      %v278 = vld [vmem:[%s228 + $0x6c] sm:$0xf]
      %v279 = vld [vmem:[%s228 + $0x70] sm:$0xf]
      %v280 = vld [vmem:[%s228 + $0x74] sm:$0xf]
      %v281 = vld [vmem:[%s228 + $0x78] sm:$0xf]
      %v282 = vld [vmem:[%s228 + $0x7c] sm:$0xf]
      %v283 = vld [vmem:[%s228 + $0x80] sm:$0xf]
      %v284 = vld [vmem:[%s228 + $0x84] sm:$0xf]
      %v285 = vld [vmem:[%s228 + $0x88] sm:$0xf]
      %v286 = vld [vmem:[%s228 + $0x8c] sm:$0xf]
      %v287 = vld [vmem:[%s234] sm:$0xf]
      %v288 = vld [vmem:[%s234 + $0x4] sm:$0xf]
      %v325 = vunpack.c.l.b16 %v251
      %v326 = vunpack.c.l.b16 %v252
      %v327 = vunpack.c.l.b16 %v253
      %v328 = vunpack.c.l.b16 %v254
      %v329 = vunpack.c.l.b16 %v255
      %v330 = vunpack.c.l.b16 %v256
      %v331 = vunpack.c.l.b16 %v257
      %v332 = vunpack.c.l.b16 %v258
      %v333 = vunpack.c.l.b16 %v259
      %v334 = vunpack.c.l.b16 %v260
      %v335 = vunpack.c.l.b16 %v261
      %v336 = vunpack.c.l.b16 %v262
      %v337 = vunpack.c.l.b16 %v263
      %v338 = vunpack.c.l.b16 %v264
      %v339 = vunpack.c.l.b16 %v265
      %v340 = vunpack.c.l.b16 %v266
      %v341 = vunpack.c.l.b16 %v267
      %v342 = vunpack.c.l.b16 %v268
      %v343 = vunpack.c.l.b16 %v269
      %v344 = vunpack.c.l.b16 %v270
      %v345 = vunpack.c.l.b16 %v271
      %v346 = vunpack.c.l.b16 %v272
      %v347 = vunpack.c.l.b16 %v273
      %v348 = vunpack.c.l.b16 %v274
      %v349 = vunpack.c.l.b16 %v275
      %v350 = vunpack.c.l.b16 %v276
      %v351 = vunpack.c.l.b16 %v277
      %v352 = vunpack.c.l.b16 %v278
      %v353 = vunpack.c.l.b16 %v279
      %v354 = vunpack.c.l.b16 %v280
      %v355 = vunpack.c.l.b16 %v281
      %v356 = vunpack.c.l.b16 %v282
      %v357 = vunpack.c.l.b16 %v283
      %v358 = vunpack.c.l.b16 %v284
      %v359 = vunpack.c.l.b16 %v285
      %v360 = vunpack.c.l.b16 %v286
      %v361 = vpack.c.b16 %v326, %v325
      %v362 = vpack.c.b16 %v328, %v327
      %v363 = vpack.c.b16 %v330, %v329
      %v364 = vpack.c.b16 %v332, %v331
      %v365 = vpack.c.b16 %v334, %v333
      %v366 = vpack.c.b16 %v336, %v335
      %v367 = vpack.c.b16 %v338, %v337
      %v368 = vpack.c.b16 %v340, %v339
      %v369 = vpack.c.b16 %v342, %v341
      %v370 = vpack.c.b16 %v344, %v343
      %v371 = vpack.c.b16 %v346, %v345
      %v372 = vpack.c.b16 %v348, %v347
      %v373 = vpack.c.b16 %v350, %v349
      %v374 = vpack.c.b16 %v352, %v351
      %v375 = vpack.c.b16 %v354, %v353
      %v376 = vpack.c.b16 %v356, %v355
      %v377 = vpack.c.b16 %v358, %v357
      %v378 = vpack.c.b16 %v360, %v359
      %v381 = vunpack.c.l.b16 %v287
      %v382 = vunpack.c.l.b16 %v288
      %v383 = vpack.c.b16 %v382, %v381
      %vm385 = vcmask 130048
      %v387 = vsel %vm385, %v361, 0
      %v390 = vsel %vm385, %v362, 0
      %v393 = vsel %vm385, %v363, 0
      %v396 = vsel %vm385, %v364, 0
      %v399 = vsel %vm385, %v365, 0
      %v402 = vsel %vm385, %v366, 0
      %v405 = vsel %vm385, %v367, 0
      %v408 = vsel %vm385, %v368, 0
      %v411 = vsel %vm385, %v369, 0
      %v414 = vsel %vm385, %v370, 0
      %v417 = vsel %vm385, %v371, 0
      %v420 = vsel %vm385, %v372, 0
      %v423 = vsel %vm385, %v373, 0
      %v426 = vsel %vm385, %v374, 0
      %v429 = vsel %vm385, %v375, 0
      %v432 = vsel %vm385, %v376, 0
      %v435 = vsel %vm385, %v377, 0
      %v438 = vsel %vm385, %v378, 0
      %440 = vmatprep.subr.bf16.mxu0 0
      %441 = vmatpush1.bf16.msra.mxu0 %v383
      %442 = vmatprep.subr.bf16.mxu0 0
      %443 = vmatpush1.bf16.msra.mxu0 0
      %444 = vmatprep.subr.bf16.mxu0 0
      %445 = vmatpush1.bf16.msra.mxu0 0
      %446 = vmatprep.subr.bf16.mxu0 0
      %447 = vmatpush1.bf16.msra.mxu0 0
      %448 = vmatprep.subr.bf16.mxu0 0
      %449 = vmatpush1.bf16.msra.mxu0 0
      %450 = vmatprep.subr.bf16.mxu0 0
      %451 = vmatpush1.bf16.msra.mxu0 0
      %452 = vmatprep.subr.bf16.mxu0 0
      %453 = vmatpush1.bf16.msra.mxu0 0
      %454 = vmatprep.subr.bf16.mxu0 0
      %455 = vmatpush1.bf16.msra.mxu0 0
      %456 = vmatprep.subr.bf16.mxu0 0
      %457 = vmatpush1.bf16.msra.mxu0 0
      %458 = vmatprep.subr.bf16.mxu0 0
      %459 = vmatpush1.bf16.msra.mxu0 0
      %460 = vmatprep.subr.bf16.mxu0 0
      %461 = vmatpush1.bf16.msra.mxu0 0
      %462 = vmatprep.subr.bf16.mxu0 0
      %463 = vmatpush1.bf16.msra.mxu0 0
      %464 = vmatprep.subr.bf16.mxu0 0
      %465 = vmatpush1.bf16.msra.mxu0 0
      %466 = vmatprep.subr.bf16.mxu0 0
      %467 = vmatpush1.bf16.msra.mxu0 0
      %468 = vmatprep.subr.bf16.mxu0 0
      %469 = vmatpush1.bf16.msra.mxu0 0
      %470 = vmatprep.subr.bf16.mxu0 0
      %471 = vmatpush1.bf16.msra.mxu0 0
      %472 = vmatprep.mubr.bf16.mxu0 0
      %473 = vmatmul.mubr.bf16.gmra.mrb[0].mxu0 %v387
      %v474 = vpop.f32.mrb[0].mxu0
      %v475 = vadd.f32 0.0, %v474
      %v476 = vpop.f32.mrb[0].mxu0
      %v477 = vpop.f32.mrb[0].mxu0
      %v478 = vadd.f32 0.0, %v477
      %v479 = vpop.f32.mrb[0].mxu0
      %480 = vmatprep.mubr.bf16.mxu0 0
      %481 = vmatmul.mubr.bf16.gmra.mrb[0].mxu0 %v390
      %v482 = vpop.f32.mrb[0].mxu0
      %v483 = vadd.f32 0.0, %v482
      %v484 = vpop.f32.mrb[0].mxu0
      %v485 = vpop.f32.mrb[0].mxu0
      %v486 = vadd.f32 0.0, %v485
      %v487 = vpop.f32.mrb[0].mxu0
      %488 = vmatprep.mubr.bf16.mxu0 0
      %489 = vmatmul.mubr.bf16.gmra.mrb[0].mxu0 %v393
      %v490 = vpop.f32.mrb[0].mxu0
      %v491 = vadd.f32 0.0, %v490
      %v492 = vpop.f32.mrb[0].mxu0
      %v493 = vpop.f32.mrb[0].mxu0
      %v494 = vadd.f32 0.0, %v493
      %v495 = vpop.f32.mrb[0].mxu0
      %496 = vmatprep.mubr.bf16.mxu0 0
      %497 = vmatmul.mubr.bf16.gmra.mrb[0].mxu0 %v396
      %v498 = vpop.f32.mrb[0].mxu0
      %v499 = vadd.f32 0.0, %v498
      %v500 = vpop.f32.mrb[0].mxu0
      %v501 = vpop.f32.mrb[0].mxu0
      %v502 = vadd.f32 0.0, %v501
      %v503 = vpop.f32.mrb[0].mxu0
      %504 = vmatprep.mubr.bf16.mxu0 0
      %505 = vmatmul.mubr.bf16.gmra.mrb[0].mxu0 %v399
      %v506 = vpop.f32.mrb[0].mxu0
      %v507 = vadd.f32 0.0, %v506
      %v508 = vpop.f32.mrb[0].mxu0
      %v509 = vpop.f32.mrb[0].mxu0
      %v510 = vadd.f32 0.0, %v509
      %v511 = vpop.f32.mrb[0].mxu0
      %512 = vmatprep.mubr.bf16.mxu0 0
      %513 = vmatmul.mubr.bf16.gmra.mrb[0].mxu0 %v402
      %v514 = vpop.f32.mrb[0].mxu0
      %v515 = vadd.f32 0.0, %v514
      %v516 = vpop.f32.mrb[0].mxu0
      %v517 = vpop.f32.mrb[0].mxu0
      %v518 = vadd.f32 0.0, %v517
      %v519 = vpop.f32.mrb[0].mxu0
      %520 = vmatprep.mubr.bf16.mxu0 0
      %521 = vmatmul.mubr.bf16.gmra.mrb[0].mxu0 %v405
      %v522 = vpop.f32.mrb[0].mxu0
      %v523 = vadd.f32 0.0, %v522
      %v524 = vpop.f32.mrb[0].mxu0
      %v525 = vpop.f32.mrb[0].mxu0
      %v526 = vadd.f32 0.0, %v525
      %v527 = vpop.f32.mrb[0].mxu0
      %528 = vmatprep.mubr.bf16.mxu0 0
      %529 = vmatmul.mubr.bf16.gmra.mrb[0].mxu0 %v408
      %v530 = vpop.f32.mrb[0].mxu0
      %v531 = vadd.f32 0.0, %v530
      %v532 = vpop.f32.mrb[0].mxu0
      %v533 = vpop.f32.mrb[0].mxu0
      %v534 = vadd.f32 0.0, %v533
      %v535 = vpop.f32.mrb[0].mxu0
      %536 = vmatprep.mubr.bf16.mxu0 0
      %537 = vmatmul.mubr.bf16.gmra.mrb[0].mxu0 %v411
      %v538 = vpop.f32.mrb[0].mxu0
      %v539 = vadd.f32 0.0, %v538
      %v540 = vpop.f32.mrb[0].mxu0
      %v541 = vpop.f32.mrb[0].mxu0
      %v542 = vadd.f32 0.0, %v541
      %v543 = vpop.f32.mrb[0].mxu0
      %544 = vmatprep.mubr.bf16.mxu0 0
      %545 = vmatmul.mubr.bf16.gmra.mrb[0].mxu0 %v414
      %v546 = vpop.f32.mrb[0].mxu0
      %v547 = vadd.f32 0.0, %v546
      %v548 = vpop.f32.mrb[0].mxu0
      %v549 = vpop.f32.mrb[0].mxu0
      %v550 = vadd.f32 0.0, %v549
      %v551 = vpop.f32.mrb[0].mxu0
      %552 = vmatprep.mubr.bf16.mxu0 0
      %553 = vmatmul.mubr.bf16.gmra.mrb[0].mxu0 %v417
      %v554 = vpop.f32.mrb[0].mxu0
      %v555 = vadd.f32 0.0, %v554
      %v556 = vpop.f32.mrb[0].mxu0
      %v557 = vpop.f32.mrb[0].mxu0
      %v558 = vadd.f32 0.0, %v557
      %v559 = vpop.f32.mrb[0].mxu0
      %560 = vmatprep.mubr.bf16.mxu0 0
      %561 = vmatmul.mubr.bf16.gmra.mrb[0].mxu0 %v420
      %v562 = vpop.f32.mrb[0].mxu0
      %v563 = vadd.f32 0.0, %v562
      %v564 = vpop.f32.mrb[0].mxu0
      %v565 = vpop.f32.mrb[0].mxu0
      %v566 = vadd.f32 0.0, %v565
      %v567 = vpop.f32.mrb[0].mxu0
      %568 = vmatprep.mubr.bf16.mxu0 0
      %569 = vmatmul.mubr.bf16.gmra.mrb[0].mxu0 %v423
      %v570 = vpop.f32.mrb[0].mxu0
      %v571 = vadd.f32 0.0, %v570
      %v572 = vpop.f32.mrb[0].mxu0
      %v573 = vpop.f32.mrb[0].mxu0
      %v574 = vadd.f32 0.0, %v573
      %v575 = vpop.f32.mrb[0].mxu0
      %576 = vmatprep.mubr.bf16.mxu0 0
      %577 = vmatmul.mubr.bf16.gmra.mrb[0].mxu0 %v426
      %v578 = vpop.f32.mrb[0].mxu0
      %v579 = vadd.f32 0.0, %v578
      %v580 = vpop.f32.mrb[0].mxu0
      %v581 = vpop.f32.mrb[0].mxu0
      %v582 = vadd.f32 0.0, %v581
      %v583 = vpop.f32.mrb[0].mxu0
      %584 = vmatprep.mubr.bf16.mxu0 0
      %585 = vmatmul.mubr.bf16.gmra.mrb[0].mxu0 %v429
      %v586 = vpop.f32.mrb[0].mxu0
      %v587 = vadd.f32 0.0, %v586
      %v588 = vpop.f32.mrb[0].mxu0
      %v589 = vpop.f32.mrb[0].mxu0
      %v590 = vadd.f32 0.0, %v589
      %v591 = vpop.f32.mrb[0].mxu0
      %592 = vmatprep.mubr.bf16.mxu0 0
      %593 = vmatmul.mubr.bf16.gmra.mrb[0].mxu0 %v432
      %v594 = vpop.f32.mrb[0].mxu0
      %v595 = vadd.f32 0.0, %v594
      %v596 = vpop.f32.mrb[0].mxu0
      %v597 = vpop.f32.mrb[0].mxu0
      %v598 = vadd.f32 0.0, %v597
      %v599 = vpop.f32.mrb[0].mxu0
      %600 = vmatprep.mubr.bf16.mxu0 0
      %601 = vmatmul.mubr.bf16.gmra.mrb[0].mxu0 %v435
      %v602 = vpop.f32.mrb[0].mxu0
      %v603 = vadd.f32 0.0, %v602
      %v604 = vpop.f32.mrb[0].mxu0
      %v605 = vpop.f32.mrb[0].mxu0
      %v606 = vadd.f32 0.0, %v605
      %v607 = vpop.f32.mrb[0].mxu0
      %608 = vmatprep.mubr.bf16.mxu0 0
      %609 = vmatmul.mubr.bf16.gmra.mrb[0].mxu0 %v438
      %v610 = vpop.f32.mrb[0].mxu0
      %v611 = vadd.f32 0.0, %v610
      %v612 = vpop.f32.mrb[0].mxu0
      %v613 = vpop.f32.mrb[0].mxu0
      %v614 = vadd.f32 0.0, %v613
      %v615 = vpop.f32.mrb[0].mxu0
      %616 = vdwg.mxu0
      %v617 = vmax.f32 %v475, 0.0
      %v618 = vmax.f32 %v478, 0.0
      %v619 = vmax.f32 %v483, 0.0
      %v620 = vmax.f32 %v486, 0.0
      %v621 = vmax.f32 %v491, 0.0
      %v622 = vmax.f32 %v494, 0.0
      %v623 = vmax.f32 %v499, 0.0
      %v624 = vmax.f32 %v502, 0.0
      %v625 = vmax.f32 %v507, 0.0
      %v626 = vmax.f32 %v510, 0.0
      %v627 = vmax.f32 %v515, 0.0
      %v628 = vmax.f32 %v518, 0.0
      %v629 = vmax.f32 %v523, 0.0
      %v630 = vmax.f32 %v526, 0.0
      %v631 = vmax.f32 %v531, 0.0
      %v632 = vmax.f32 %v534, 0.0
      %v633 = vmax.f32 %v539, 0.0
      %v634 = vmax.f32 %v542, 0.0
      %v635 = vmax.f32 %v547, 0.0
      %v636 = vmax.f32 %v550, 0.0
      %v637 = vmax.f32 %v555, 0.0
      %v638 = vmax.f32 %v558, 0.0
      %v639 = vmax.f32 %v563, 0.0
      %v640 = vmax.f32 %v566, 0.0
      %v641 = vmax.f32 %v571, 0.0
      %v642 = vmax.f32 %v574, 0.0
      %v643 = vmax.f32 %v579, 0.0
      %v644 = vmax.f32 %v582, 0.0
      %v645 = vmax.f32 %v587, 0.0
      %v646 = vmax.f32 %v590, 0.0
      %v647 = vmax.f32 %v595, 0.0
      %v648 = vmax.f32 %v598, 0.0
      %v649 = vmax.f32 %v603, 0.0
      %v650 = vmax.f32 %v606, 0.0
      %v651 = vmax.f32 %v611, 0.0
      %v652 = vmax.f32 %v614, 0.0
      %v653 = vpack.c.bf16 %v618, %v617
      %v654 = vpack.c.bf16 %v620, %v619
      %v655 = vpack.c.bf16 %v622, %v621
      %v656 = vpack.c.bf16 %v624, %v623
      %v657 = vpack.c.bf16 %v626, %v625
      %v658 = vpack.c.bf16 %v628, %v627
      %v659 = vpack.c.bf16 %v630, %v629
      %v660 = vpack.c.bf16 %v632, %v631
      %v661 = vpack.c.bf16 %v634, %v633
      %v662 = vpack.c.bf16 %v636, %v635
      %v663 = vpack.c.bf16 %v638, %v637
      %v664 = vpack.c.bf16 %v640, %v639
      %v665 = vpack.c.bf16 %v642, %v641
      %v666 = vpack.c.bf16 %v644, %v643
      %v667 = vpack.c.bf16 %v646, %v645
      %v668 = vpack.c.bf16 %v648, %v647
      %v669 = vpack.c.bf16 %v650, %v649
      %v670 = vpack.c.bf16 %v652, %v651
      %v671 = vld [vmem:[%s239] sm:$0xf]
      %v672 = vld [vmem:[%s239 + $0x4] sm:$0xf]
      %v675 = vunpack.c.l.b16 %v671
      %v676 = vunpack.c.l.b16 %v672
      %v677 = vpack.c.b16 %v676, %v675
      %v680 = vsel %vm385, %v653, 0
      %v683 = vsel %vm385, %v654, 0
      %v686 = vsel %vm385, %v655, 0
      %v689 = vsel %vm385, %v656, 0
      %v692 = vsel %vm385, %v657, 0
      %v695 = vsel %vm385, %v658, 0
      %v698 = vsel %vm385, %v659, 0
      %v701 = vsel %vm385, %v660, 0
      %v704 = vsel %vm385, %v661, 0
      %v707 = vsel %vm385, %v662, 0
      %v710 = vsel %vm385, %v663, 0
      %v713 = vsel %vm385, %v664, 0
      %v716 = vsel %vm385, %v665, 0
      %v719 = vsel %vm385, %v666, 0
      %v722 = vsel %vm385, %v667, 0
      %v725 = vsel %vm385, %v668, 0
      %v728 = vsel %vm385, %v669, 0
      %v731 = vsel %vm385, %v670, 0
      %733 = vmatprep.subr.bf16.mxu0 0
      %734 = vmatpush1.bf16.msra.mxu0 %v677
      %735 = vmatprep.subr.bf16.mxu0 0
      %736 = vmatpush1.bf16.msra.mxu0 0
      %737 = vmatprep.subr.bf16.mxu0 0
      %738 = vmatpush1.bf16.msra.mxu0 0
      %739 = vmatprep.subr.bf16.mxu0 0
      %740 = vmatpush1.bf16.msra.mxu0 0
      %741 = vmatprep.subr.bf16.mxu0 0
      %742 = vmatpush1.bf16.msra.mxu0 0
      %743 = vmatprep.subr.bf16.mxu0 0
      %744 = vmatpush1.bf16.msra.mxu0 0
      %745 = vmatprep.subr.bf16.mxu0 0
      %746 = vmatpush1.bf16.msra.mxu0 0
      %747 = vmatprep.subr.bf16.mxu0 0
      %748 = vmatpush1.bf16.msra.mxu0 0
      %749 = vmatprep.subr.bf16.mxu0 0
      %750 = vmatpush1.bf16.msra.mxu0 0
      %751 = vmatprep.subr.bf16.mxu0 0
      %752 = vmatpush1.bf16.msra.mxu0 0
      %753 = vmatprep.subr.bf16.mxu0 0
      %754 = vmatpush1.bf16.msra.mxu0 0
      %755 = vmatprep.subr.bf16.mxu0 0
      %756 = vmatpush1.bf16.msra.mxu0 0
      %757 = vmatprep.subr.bf16.mxu0 0
      %758 = vmatpush1.bf16.msra.mxu0 0
      %759 = vmatprep.subr.bf16.mxu0 0
      %760 = vmatpush1.bf16.msra.mxu0 0
      %761 = vmatprep.subr.bf16.mxu0 0
      %762 = vmatpush1.bf16.msra.mxu0 0
      %763 = vmatprep.subr.bf16.mxu0 0
      %764 = vmatpush1.bf16.msra.mxu0 0
      %765 = vmatprep.mubr.bf16.mxu0 0
      %766 = vmatmul.mubr.bf16.gmra.mrb[0].mxu0 %v680
      %v767 = vpop.f32.mrb[0].mxu0
      %v768 = vadd.f32 0.0, %v767
      %v769 = vpop.f32.mrb[0].mxu0
      %v770 = vpop.f32.mrb[0].mxu0
      %v771 = vadd.f32 0.0, %v770
      %v772 = vpop.f32.mrb[0].mxu0
      %773 = vmatprep.mubr.bf16.mxu0 0
      %774 = vmatmul.mubr.bf16.gmra.mrb[0].mxu0 %v683
      %v775 = vpop.f32.mrb[0].mxu0
      %v776 = vadd.f32 0.0, %v775
      %v777 = vpop.f32.mrb[0].mxu0
      %v778 = vpop.f32.mrb[0].mxu0
      %v779 = vadd.f32 0.0, %v778
      %v780 = vpop.f32.mrb[0].mxu0
      %781 = vmatprep.mubr.bf16.mxu0 0
      %782 = vmatmul.mubr.bf16.gmra.mrb[0].mxu0 %v686
      %v783 = vpop.f32.mrb[0].mxu0
      %v784 = vadd.f32 0.0, %v783
      %v785 = vpop.f32.mrb[0].mxu0
      %v786 = vpop.f32.mrb[0].mxu0
      %v787 = vadd.f32 0.0, %v786
      %v788 = vpop.f32.mrb[0].mxu0
      %789 = vmatprep.mubr.bf16.mxu0 0
      %790 = vmatmul.mubr.bf16.gmra.mrb[0].mxu0 %v689
      %v791 = vpop.f32.mrb[0].mxu0
      %v792 = vadd.f32 0.0, %v791
      %v793 = vpop.f32.mrb[0].mxu0
      %v794 = vpop.f32.mrb[0].mxu0
      %v795 = vadd.f32 0.0, %v794
      %v796 = vpop.f32.mrb[0].mxu0
      %797 = vmatprep.mubr.bf16.mxu0 0
      %798 = vmatmul.mubr.bf16.gmra.mrb[0].mxu0 %v692
      %v799 = vpop.f32.mrb[0].mxu0
      %v800 = vadd.f32 0.0, %v799
      %v801 = vpop.f32.mrb[0].mxu0
      %v802 = vpop.f32.mrb[0].mxu0
      %v803 = vadd.f32 0.0, %v802
      %v804 = vpop.f32.mrb[0].mxu0
      %805 = vmatprep.mubr.bf16.mxu0 0
      %806 = vmatmul.mubr.bf16.gmra.mrb[0].mxu0 %v695
      %v807 = vpop.f32.mrb[0].mxu0
      %v808 = vadd.f32 0.0, %v807
      %v809 = vpop.f32.mrb[0].mxu0
      %v810 = vpop.f32.mrb[0].mxu0
      %v811 = vadd.f32 0.0, %v810
      %v812 = vpop.f32.mrb[0].mxu0
      %813 = vmatprep.mubr.bf16.mxu0 0
      %814 = vmatmul.mubr.bf16.gmra.mrb[0].mxu0 %v698
      %v815 = vpop.f32.mrb[0].mxu0
      %v816 = vadd.f32 0.0, %v815
      %v817 = vpop.f32.mrb[0].mxu0
      %v818 = vpop.f32.mrb[0].mxu0
      %v819 = vadd.f32 0.0, %v818
      %v820 = vpop.f32.mrb[0].mxu0
      %821 = vmatprep.mubr.bf16.mxu0 0
      %822 = vmatmul.mubr.bf16.gmra.mrb[0].mxu0 %v701
      %v823 = vpop.f32.mrb[0].mxu0
      %v824 = vadd.f32 0.0, %v823
      %v825 = vpop.f32.mrb[0].mxu0
      %v826 = vpop.f32.mrb[0].mxu0
      %v827 = vadd.f32 0.0, %v826
      %v828 = vpop.f32.mrb[0].mxu0
      %829 = vmatprep.mubr.bf16.mxu0 0
      %830 = vmatmul.mubr.bf16.gmra.mrb[0].mxu0 %v704
      %v831 = vpop.f32.mrb[0].mxu0
      %v832 = vadd.f32 0.0, %v831
      %v833 = vpop.f32.mrb[0].mxu0
      %v834 = vpop.f32.mrb[0].mxu0
      %v835 = vadd.f32 0.0, %v834
      %v836 = vpop.f32.mrb[0].mxu0
      %837 = vmatprep.mubr.bf16.mxu0 0
      %838 = vmatmul.mubr.bf16.gmra.mrb[0].mxu0 %v707
      %v839 = vpop.f32.mrb[0].mxu0
      %v840 = vadd.f32 0.0, %v839
      %v841 = vpop.f32.mrb[0].mxu0
      %v842 = vpop.f32.mrb[0].mxu0
      %v843 = vadd.f32 0.0, %v842
      %v844 = vpop.f32.mrb[0].mxu0
      %845 = vmatprep.mubr.bf16.mxu0 0
      %846 = vmatmul.mubr.bf16.gmra.mrb[0].mxu0 %v710
      %v847 = vpop.f32.mrb[0].mxu0
      %v848 = vadd.f32 0.0, %v847
      %v849 = vpop.f32.mrb[0].mxu0
      %v850 = vpop.f32.mrb[0].mxu0
      %v851 = vadd.f32 0.0, %v850
      %v852 = vpop.f32.mrb[0].mxu0
      %853 = vmatprep.mubr.bf16.mxu0 0
      %854 = vmatmul.mubr.bf16.gmra.mrb[0].mxu0 %v713
      %v855 = vpop.f32.mrb[0].mxu0
      %v856 = vadd.f32 0.0, %v855
      %v857 = vpop.f32.mrb[0].mxu0
      %v858 = vpop.f32.mrb[0].mxu0
      %v859 = vadd.f32 0.0, %v858
      %v860 = vpop.f32.mrb[0].mxu0
      %861 = vmatprep.mubr.bf16.mxu0 0
      %862 = vmatmul.mubr.bf16.gmra.mrb[0].mxu0 %v716
      %v863 = vpop.f32.mrb[0].mxu0
      %v864 = vadd.f32 0.0, %v863
      %v865 = vpop.f32.mrb[0].mxu0
      %v866 = vpop.f32.mrb[0].mxu0
      %v867 = vadd.f32 0.0, %v866
      %v868 = vpop.f32.mrb[0].mxu0
      %869 = vmatprep.mubr.bf16.mxu0 0
      %870 = vmatmul.mubr.bf16.gmra.mrb[0].mxu0 %v719
      %v871 = vpop.f32.mrb[0].mxu0
      %v872 = vadd.f32 0.0, %v871
      %v873 = vpop.f32.mrb[0].mxu0
      %v874 = vpop.f32.mrb[0].mxu0
      %v875 = vadd.f32 0.0, %v874
      %v876 = vpop.f32.mrb[0].mxu0
      %877 = vmatprep.mubr.bf16.mxu0 0
      %878 = vmatmul.mubr.bf16.gmra.mrb[0].mxu0 %v722
      %v879 = vpop.f32.mrb[0].mxu0
      %v880 = vadd.f32 0.0, %v879
      %v881 = vpop.f32.mrb[0].mxu0
      %v882 = vpop.f32.mrb[0].mxu0
      %v883 = vadd.f32 0.0, %v882
      %v884 = vpop.f32.mrb[0].mxu0
      %885 = vmatprep.mubr.bf16.mxu0 0
      %886 = vmatmul.mubr.bf16.gmra.mrb[0].mxu0 %v725
      %v887 = vpop.f32.mrb[0].mxu0
      %v888 = vadd.f32 0.0, %v887
      %v889 = vpop.f32.mrb[0].mxu0
      %v890 = vpop.f32.mrb[0].mxu0
      %v891 = vadd.f32 0.0, %v890
      %v892 = vpop.f32.mrb[0].mxu0
      %893 = vmatprep.mubr.bf16.mxu0 0
      %894 = vmatmul.mubr.bf16.gmra.mrb[0].mxu0 %v728
      %v895 = vpop.f32.mrb[0].mxu0
      %v896 = vadd.f32 0.0, %v895
      %v897 = vpop.f32.mrb[0].mxu0
      %v898 = vpop.f32.mrb[0].mxu0
      %v899 = vadd.f32 0.0, %v898
      %v900 = vpop.f32.mrb[0].mxu0
      %901 = vmatprep.mubr.bf16.mxu0 0
      %902 = vmatmul.mubr.bf16.gmra.mrb[0].mxu0 %v731
      %v903 = vpop.f32.mrb[0].mxu0
      %v904 = vadd.f32 0.0, %v903
      %v905 = vpop.f32.mrb[0].mxu0
      %v906 = vpop.f32.mrb[0].mxu0
      %v907 = vadd.f32 0.0, %v906
      %v908 = vpop.f32.mrb[0].mxu0
      %909 = vdwg.mxu0
      %v910 = vpack.c.bf16 %v771, %v768
      %v911 = vpack.c.bf16 %v779, %v776
      %v912 = vpack.c.bf16 %v787, %v784
      %v913 = vpack.c.bf16 %v795, %v792
      %v914 = vpack.c.bf16 %v803, %v800
      %v915 = vpack.c.bf16 %v811, %v808
      %v916 = vpack.c.bf16 %v819, %v816
      %v917 = vpack.c.bf16 %v827, %v824
      %v918 = vpack.c.bf16 %v835, %v832
      %v919 = vpack.c.bf16 %v843, %v840
      %v920 = vpack.c.bf16 %v851, %v848
      %v921 = vpack.c.bf16 %v859, %v856
      %v922 = vpack.c.bf16 %v867, %v864
      %v923 = vpack.c.bf16 %v875, %v872
      %v924 = vpack.c.bf16 %v883, %v880
      %v925 = vpack.c.bf16 %v891, %v888
      %v926 = vpack.c.bf16 %v899, %v896
      %v927 = vpack.c.bf16 %v907, %v904
      %v946 = vunpack.c.l.b16 %v910
      %v947 = vunpack.c.h.b16 %v910
      %v948 = vunpack.c.l.b16 %v911
      %v949 = vunpack.c.h.b16 %v911
      %v950 = vunpack.c.l.b16 %v912
      %v951 = vunpack.c.h.b16 %v912
      %v952 = vunpack.c.l.b16 %v913
      %v953 = vunpack.c.h.b16 %v913
      %v954 = vunpack.c.l.b16 %v914
      %v955 = vunpack.c.h.b16 %v914
      %v956 = vunpack.c.l.b16 %v915
      %v957 = vunpack.c.h.b16 %v915
      %v958 = vunpack.c.l.b16 %v916
      %v959 = vunpack.c.h.b16 %v916
      %v960 = vunpack.c.l.b16 %v917
      %v961 = vunpack.c.h.b16 %v917
      %v962 = vunpack.c.l.b16 %v918
      %v963 = vunpack.c.h.b16 %v918
      %v964 = vunpack.c.l.b16 %v919
      %v965 = vunpack.c.h.b16 %v919
      %v966 = vunpack.c.l.b16 %v920
      %v967 = vunpack.c.h.b16 %v920
      %v968 = vunpack.c.l.b16 %v921
      %v969 = vunpack.c.h.b16 %v921
      %v970 = vunpack.c.l.b16 %v922
      %v971 = vunpack.c.h.b16 %v922
      %v972 = vunpack.c.l.b16 %v923
      %v973 = vunpack.c.h.b16 %v923
      %v974 = vunpack.c.l.b16 %v924
      %v975 = vunpack.c.h.b16 %v924
      %v976 = vunpack.c.l.b16 %v925
      %v977 = vunpack.c.h.b16 %v925
      %v978 = vunpack.c.l.b16 %v926
      %v979 = vunpack.c.h.b16 %v926
      %v980 = vunpack.c.l.b16 %v927
      %v981 = vunpack.c.h.b16 %v927
      %v982 = vpack.c.b16 %v946, %v946
      %v983 = vpack.c.b16 %v947, %v947
      %v984 = vpack.c.b16 %v948, %v948
      %v985 = vpack.c.b16 %v949, %v949
      %v986 = vpack.c.b16 %v950, %v950
      %v987 = vpack.c.b16 %v951, %v951
      %v988 = vpack.c.b16 %v952, %v952
      %v989 = vpack.c.b16 %v953, %v953
      %v990 = vpack.c.b16 %v954, %v954
      %v991 = vpack.c.b16 %v955, %v955
      %v992 = vpack.c.b16 %v956, %v956
      %v993 = vpack.c.b16 %v957, %v957
      %v994 = vpack.c.b16 %v958, %v958
      %v995 = vpack.c.b16 %v959, %v959
      %v996 = vpack.c.b16 %v960, %v960
      %v997 = vpack.c.b16 %v961, %v961
      %v998 = vpack.c.b16 %v962, %v962
      %v999 = vpack.c.b16 %v963, %v963
      %v1000 = vpack.c.b16 %v964, %v964
      %v1001 = vpack.c.b16 %v965, %v965
      %v1002 = vpack.c.b16 %v966, %v966
      %v1003 = vpack.c.b16 %v967, %v967
      %v1004 = vpack.c.b16 %v968, %v968
      %v1005 = vpack.c.b16 %v969, %v969
      %v1006 = vpack.c.b16 %v970, %v970
      %v1007 = vpack.c.b16 %v971, %v971
      %v1008 = vpack.c.b16 %v972, %v972
      %v1009 = vpack.c.b16 %v973, %v973
      %v1010 = vpack.c.b16 %v974, %v974
      %v1011 = vpack.c.b16 %v975, %v975
      %v1012 = vpack.c.b16 %v976, %v976
      %v1013 = vpack.c.b16 %v977, %v977
      %v1014 = vpack.c.b16 %v978, %v978
      %v1015 = vpack.c.b16 %v979, %v979
      %v1016 = vpack.c.b16 %v980, %v980
      %v1017 = vpack.c.b16 %v981, %v981
      %vm1054 = vcmask 125952
      %1055 = vst.msk [vmem:[%s248] sm:$0xf] %vm1054, %v982
      %1056 = vst.msk [vmem:[%s248 + $0x4] sm:$0xf] %vm1054, %v983
      %1057 = vst.msk [vmem:[%s248 + $0x8] sm:$0xf] %vm1054, %v984
      %1058 = vst.msk [vmem:[%s248 + $0xc] sm:$0xf] %vm1054, %v985
      %1059 = vst.msk [vmem:[%s248 + $0x10] sm:$0xf] %vm1054, %v986
      %1060 = vst.msk [vmem:[%s248 + $0x14] sm:$0xf] %vm1054, %v987
      %1061 = vst.msk [vmem:[%s248 + $0x18] sm:$0xf] %vm1054, %v988
      %1062 = vst.msk [vmem:[%s248 + $0x1c] sm:$0xf] %vm1054, %v989
      %1063 = vst.msk [vmem:[%s248 + $0x20] sm:$0xf] %vm1054, %v990
      %1064 = vst.msk [vmem:[%s248 + $0x24] sm:$0xf] %vm1054, %v991
      %1065 = vst.msk [vmem:[%s248 + $0x28] sm:$0xf] %vm1054, %v992
      %1066 = vst.msk [vmem:[%s248 + $0x2c] sm:$0xf] %vm1054, %v993
      %1067 = vst.msk [vmem:[%s248 + $0x30] sm:$0xf] %vm1054, %v994
      %1068 = vst.msk [vmem:[%s248 + $0x34] sm:$0xf] %vm1054, %v995
      %1069 = vst.msk [vmem:[%s248 + $0x38] sm:$0xf] %vm1054, %v996
      %1070 = vst.msk [vmem:[%s248 + $0x3c] sm:$0xf] %vm1054, %v997
      %1071 = vst.msk [vmem:[%s248 + $0x40] sm:$0xf] %vm1054, %v998
      %1072 = vst.msk [vmem:[%s248 + $0x44] sm:$0xf] %vm1054, %v999
      %1073 = vst.msk [vmem:[%s248 + $0x48] sm:$0xf] %vm1054, %v1000
      %1074 = vst.msk [vmem:[%s248 + $0x4c] sm:$0xf] %vm1054, %v1001
      %1075 = vst.msk [vmem:[%s248 + $0x50] sm:$0xf] %vm1054, %v1002
      %1076 = vst.msk [vmem:[%s248 + $0x54] sm:$0xf] %vm1054, %v1003
      %1077 = vst.msk [vmem:[%s248 + $0x58] sm:$0xf] %vm1054, %v1004
      %1078 = vst.msk [vmem:[%s248 + $0x5c] sm:$0xf] %vm1054, %v1005
      %1079 = vst.msk [vmem:[%s248 + $0x60] sm:$0xf] %vm1054, %v1006
      %1080 = vst.msk [vmem:[%s248 + $0x64] sm:$0xf] %vm1054, %v1007
      %1081 = vst.msk [vmem:[%s248 + $0x68] sm:$0xf] %vm1054, %v1008
      %1082 = vst.msk [vmem:[%s248 + $0x6c] sm:$0xf] %vm1054, %v1009
      %1083 = vst.msk [vmem:[%s248 + $0x70] sm:$0xf] %vm1054, %v1010
      %1084 = vst.msk [vmem:[%s248 + $0x74] sm:$0xf] %vm1054, %v1011
      %1085 = vst.msk [vmem:[%s248 + $0x78] sm:$0xf] %vm1054, %v1012
      %1086 = vst.msk [vmem:[%s248 + $0x7c] sm:$0xf] %vm1054, %v1013
      %1087 = vst.msk [vmem:[%s248 + $0x80] sm:$0xf] %vm1054, %v1014
      %1088 = vst.msk [vmem:[%s248 + $0x84] sm:$0xf] %vm1054, %v1015
      %1089 = vst.msk [vmem:[%s248 + $0x88] sm:$0xf] %vm1054, %v1016
      %1090 = vst.msk [vmem:[%s248 + $0x8c] sm:$0xf] %vm1054, %v1017
      %s1091 = smul.u32 36, %s19
      %p1092 = scmp.lt.s32.totalorder %s18, 3
      %s1093 = scalar_select %p1092, %s18, 3
      %p1094 = scmp.lt.s32.totalorder %s1091, 35
      %s1095 = scalar_select %p1094, %s1091, 35
      %s1096 = smul.addr %s1093, 36
      %s1097 = sadd.s32 %s1095, %s1096
      %s1098 = smul.addr %s1097, 4
      %s1099 = scalar_lea.vmem %s3, %s1098
      // Predicated region
      $region33: #{afno2d_forward.1} parent=31 // pred_check
        %p1100 = pneg %p126
      $region34: #{afno2d_forward.1} parent=31 // pred_check_branch
        %1102 = sbr.rel (%p1100) target = $region36
      $region35: #{afno2d_forward.1} parent=31 // pred_region
        %s1103 = smul.u32 36, %s19
      $region36: #{afno2d_forward.1} parent=31 // pred_fallthru
        _
    $region32: #{afno2d_forward.1} parent=5 // pred_fallthru
      _
    %p1104 = scmp.le.s32.totalorder 2, %s9
    // Predicated region
    $region37: #{afno2d_forward.1} parent=5 // pred_check
      %p1105 = pneg %p1104
    $region38: #{afno2d_forward.1} parent=5 // pred_check_branch
      %1107 = sbr.rel (%p1105) target = $region40
    $region39: #{afno2d_forward.1} parent=5 // pred_region
      %s1108 = ssub.s32 %s9, 2
      // Predicated region
      $region41: #{afno2d_forward.1} parent=39 // pred_check
        %p1109 = pneg %p132
      $region42: #{afno2d_forward.1} parent=39 // pred_check_branch
        %1111 = sbr.rel (%p1109) target = $region44
      $region43: #{afno2d_forward.1} parent=39 // pred_region
        %s1112 = smul.u32 36, %s21
        %p1113 = scmp.lt.s32.totalorder %s20, 3
        %s1114 = scalar_select %p1113, %s20, 3
        %p1115 = scmp.lt.s32.totalorder %s1112, 35
        %s1116 = scalar_select %p1115, %s1112, 35
        %s1117 = smul.addr %s1114, 36
        %s1118 = sadd.s32 %s1116, %s1117
        %s1119 = smul.addr %s1118, 4
        %s1120 = scalar_lea.vmem %s3, %s1119
      $region44: #{afno2d_forward.1} parent=39 // pred_fallthru
        _
    $region40: #{afno2d_forward.1} parent=5 // pred_fallthru
      _
  $region6: #{afno2d_forward.1} parent=0 // loop_footer
    %s13 = sadd.s32 1, %s9
  $region7: #{afno2d_forward.1} parent=0 // loop_footer_branch
    %8 = sbr.rel target = $region3
  $region8: #{afno2d_forward.1} parent=0 // loop_exit
    _

// kernel: reverse.1
$region0: #{reverse.1}
  #allocation0 [shape = 's32[1]{0}', space=sflag, size = 0x4, scoped, tag = 'scoped memory for reverse.1']
  %s0 = inlined_call_operand.vmem [shape: f32[2,32,16,7], index: 0, kind: input, shape index: {}]
  %s1 = inlined_call_operand.vmem [shape: f32[2,32,16,7], index: 1, kind: output, shape index: {}]
  %s2 = scalar_lea.vmem %s0, 96
  %v3 = vld [vmem:[%s2] sm:$0xff]
  %4 = vst [vmem:[%s1] sm:$0xff] %v3
  %s5 = scalar_lea.vmem %s0, 208
  %v6 = vld [vmem:[%s5] sm:$0xff]
  %s7 = scalar_lea.vmem %s1, 112
  %8 = vst [vmem:[%s7] sm:$0xff] %v6
  %s9 = scalar_lea.vmem %s0, 80
  %v10 = vld [vmem:[%s9] sm:$0xff]
  %s11 = scalar_lea.vmem %s1, 16
  %12 = vst [vmem:[%s11] sm:$0xff] %v10
  %s13 = scalar_lea.vmem %s0, 192
  %v14 = vld [vmem:[%s13] sm:$0xff]
  %s15 = scalar_lea.vmem %s1, 128
  %16 = vst [vmem:[%s15] sm:$0xff] %v14
  %s17 = scalar_lea.vmem %s0, 64
  %v18 = vld [vmem:[%s17] sm:$0xff]
  %s19 = scalar_lea.vmem %s1, 32
  %20 = vst [vmem:[%s19] sm:$0xff] %v18
  %s21 = scalar_lea.vmem %s0, 176
  %v22 = vld [vmem:[%s21] sm:$0xff]
  %s23 = scalar_lea.vmem %s1, 144
  %24 = vst [vmem:[%s23] sm:$0xff] %v22
  %s25 = scalar_lea.vmem %s0, 48
  %v26 = vld [vmem:[%s25] sm:$0xff]
  %s27 = scalar_lea.vmem %s1, 48
  %28 = vst [vmem:[%s27] sm:$0xff] %v26
  %s29 = scalar_lea.vmem %s0, 160
  %v30 = vld [vmem:[%s29] sm:$0xff]
  %s31 = scalar_lea.vmem %s1, 160
  %32 = vst [vmem:[%s31] sm:$0xff] %v30
  %s33 = scalar_lea.vmem %s0, 32
  %v34 = vld [vmem:[%s33] sm:$0xff]
  %s35 = scalar_lea.vmem %s1, 64
  %36 = vst [vmem:[%s35] sm:$0xff] %v34
  %s37 = scalar_lea.vmem %s0, 144
  %v38 = vld [vmem:[%s37] sm:$0xff]
  %s39 = scalar_lea.vmem %s1, 176
  %40 = vst [vmem:[%s39] sm:$0xff] %v38
  %s41 = scalar_lea.vmem %s0, 16
  %v42 = vld [vmem:[%s41] sm:$0xff]
  %s43 = scalar_lea.vmem %s1, 80
  %44 = vst [vmem:[%s43] sm:$0xff] %v42
  %s45 = scalar_lea.vmem %s0, 128
  %v46 = vld [vmem:[%s45] sm:$0xff]
  %s47 = scalar_lea.vmem %s1, 192
  %48 = vst [vmem:[%s47] sm:$0xff] %v46
  %v49 = vld [vmem:[%s0] sm:$0xff]
  %s50 = scalar_lea.vmem %s1, 96
  %51 = vst [vmem:[%s50] sm:$0xff] %v49
  %s52 = scalar_lea.vmem %s0, 112
  %v53 = vld [vmem:[%s52] sm:$0xff]
  %s54 = scalar_lea.vmem %s1, 208
  %55 = vst [vmem:[%s54] sm:$0xff] %v53
  %s56 = scalar_lea.vmem %s0, 104
  %v57 = vld [vmem:[%s56] sm:$0xff]
  %s58 = scalar_lea.vmem %s1, 8
  %59 = vst [vmem:[%s58] sm:$0xff] %v57
  %s60 = scalar_lea.vmem %s0, 216
  %v61 = vld [vmem:[%s60] sm:$0xff]
  %s62 = scalar_lea.vmem %s1, 120
  %63 = vst [vmem:[%s62] sm:$0xff] %v61
  %s64 = scalar_lea.vmem %s0, 88
  %v65 = vld [vmem:[%s64] sm:$0xff]
  %s66 = scalar_lea.vmem %s1, 24
  %67 = vst [vmem:[%s66] sm:$0xff] %v65
  %s68 = scalar_lea.vmem %s0, 200
  %v69 = vld [vmem:[%s68] sm:$0xff]
  %s70 = scalar_lea.vmem %s1, 136
  %71 = vst [vmem:[%s70] sm:$0xff] %v69
  %s72 = scalar_lea.vmem %s0, 72
  %v73 = vld [vmem:[%s72] sm:$0xff]
  %s74 = scalar_lea.vmem %s1, 40
  %75 = vst [vmem:[%s74] sm:$0xff] %v73
  %s76 = scalar_lea.vmem %s0, 184
  %v77 = vld [vmem:[%s76] sm:$0xff]
  %s78 = scalar_lea.vmem %s1, 152
  %79 = vst [vmem:[%s78] sm:$0xff] %v77
  %s80 = scalar_lea.vmem %s0, 56
  %v81 = vld [vmem:[%s80] sm:$0xff]
  %s82 = scalar_lea.vmem %s1, 56
  %83 = vst [vmem:[%s82] sm:$0xff] %v81
  %s84 = scalar_lea.vmem %s0, 168
  %v85 = vld [vmem:[%s84] sm:$0xff]
  %s86 = scalar_lea.vmem %s1, 168
  %87 = vst [vmem:[%s86] sm:$0xff] %v85
  %s88 = scalar_lea.vmem %s0, 40
  %v89 = vld [vmem:[%s88] sm:$0xff]
  %s90 = scalar_lea.vmem %s1, 72
  %91 = vst [vmem:[%s90] sm:$0xff] %v89
  %s92 = scalar_lea.vmem %s0, 152
  %v93 = vld [vmem:[%s92] sm:$0xff]
  %s94 = scalar_lea.vmem %s1, 184
  %95 = vst [vmem:[%s94] sm:$0xff] %v93
  %s96 = scalar_lea.vmem %s0, 24
  %v97 = vld [vmem:[%s96] sm:$0xff]
  %s98 = scalar_lea.vmem %s1, 88
  %99 = vst [vmem:[%s98] sm:$0xff] %v97
  %s100 = scalar_lea.vmem %s0, 136
  %v101 = vld [vmem:[%s100] sm:$0xff]
  %s102 = scalar_lea.vmem %s1, 200
  %103 = vst [vmem:[%s102] sm:$0xff] %v101
  %s104 = scalar_lea.vmem %s0, 8
  %v105 = vld [vmem:[%s104] sm:$0xff]
  %s106 = scalar_lea.vmem %s1, 104
  %107 = vst [vmem:[%s106] sm:$0xff] %v105
  %s108 = scalar_lea.vmem %s0, 120
  %v109 = vld [vmem:[%s108] sm:$0xff]
  %s110 = scalar_lea.vmem %s1, 216
  %111 = vst [vmem:[%s110] sm:$0xff] %v109

</llo_original>
